<compile_context>
chip_gen: v5e
topology: v5e:2x2
jax: 0.10.0
libtpu: 0.0.40
codegen_flags: <defaults>
</compile_context>

<pallas_src>
import jax
import jax.numpy as jnp
from jax.experimental import pallas as pl
from jax.experimental.pallas import tpu as pltpu


# ----------------------------- kernels ------------------------------------ #

def _make_small_kernel(c_in, c_out):
    """Tiny-channel path (C_in, C_out < 8).

    Full-tile VALU multiply against a (C_in, 1) weight column, XLU sublane
    reduce, tanh on the EUP, and one dense (C_out, THW) store.
    """
    def kernel(wt_ref, x_ref, o_ref):
        # wt_ref: (c_in, c_out) f32 in VMEM (weight pre-transposed, resident)
        # x_ref : (1, c_in, thw) in VMEM
        # o_ref : (1, c_out, thw) in VMEM
        x = x_ref[0].astype(jnp.float32)                       # (c_in, thw)
        rows = []
        for co in range(c_out):                                # c_out < 8, unrolled
            w_col = wt_ref[:, co:co + 1].astype(jnp.float32)   # (c_in, 1)
            acc = jnp.sum(x * w_col, axis=0, keepdims=True)    # VALU mul + XLU reduce
            rows.append(jnp.tanh(acc))                         # EUP
        o_ref[0] = jnp.concatenate(rows, axis=0).astype(o_ref.dtype)  # one dense store
    return kernel


def _mxu_kernel(w_ref, x_ref, o_ref):
    """Default path: (C_out_t, C_in) @ (C_in, THW) on the MXU, tanh in f32."""
    # w_ref: (t_co, c_in) VMEM (resident); x_ref: (1, c_in, thw); o_ref: (1, t_co, thw)
    acc = jnp.dot(w_ref[...], x_ref[0], preferred_element_type=jnp.float32)
    o_ref[0] = jnp.tanh(acc).astype(o_ref.dtype)


# ----------------------------- tiling -------------------------------------- #

def _vmem_capacity_bytes():
    try:
        info = pltpu.get_tpu_info()
        return int(getattr(info, "vmem_capacity_bytes", 64 * 1024 * 1024))
    except Exception:
        return 64 * 1024 * 1024   # conservative default (v7x per-TC VMEM)


def _pick_tiles(hw, c_in, c_out, itemsize, n_batch):
    """Pick (spatial tile, C_out tile, vmem_limit_bytes), generation-aware."""
    cap = _vmem_capacity_bytes()
    t_co = c_out if c_out <= 256 else 256    # tile C_out rather than shrink thw

    if hw < 128:
        thw = hw                             # full-extent last dim is legal
    else:
        budget = cap // 3                    # double-buffered blocks <= ~1/3 of VMEM
        w_bytes = 2 * t_co * c_in * 4
        per_col = 2 * (c_in + t_co) * itemsize   # double-buffered in+out per column
        max_cols = max(128, (budget - w_bytes) // max(per_col, 1))
        thw = min(16384, max_cols)           # target 8-16K lanes per block
        thw = max(128, (thw // 128) * 128)
        thw = min(thw, (hw // 128) * 128)    # ragged remainder handled by edge block

        # Keep >= 4 total grid steps (both v7x TCs busy, pipeline has overlap).
        cout_tiles = -(-c_out // t_co)
        have = n_batch * cout_tiles
        if have * (-(-hw // thw)) < 4:
            need_sp = -(-4 // have)
            thw_cap = max(128, ((hw // need_sp) // 128) * 128)
            if thw_cap >= 512:
                thw = min(thw, thw_cap)

    in_blk = c_in * thw * itemsize
    out_blk = t_co * thw * itemsize
    w_blk = t_co * c_in * 4
    needed = 2 * (in_blk + out_blk) + 2 * w_blk + (2 << 20)
    vmem_limit = min(max(32 * 1024 * 1024, needed), cap - (4 << 20))
    return thw, t_co, int(vmem_limit)


# ----------------------------- wrapper ------------------------------------- #

def outconv_forward(x_nchw, weight):
    """1x1 conv (bias=False) + tanh.

    x_nchw: (N, C_in, H, W)
    weight: (C_out, C_in) or (C_out, C_in, 1, 1)  (PyTorch conv weight)
    returns (N, C_out, H, W), same dtype as x (bf16 activations supported).
    """
    N, C_in, H, W = x_nchw.shape
    if weight.ndim == 4:
        weight = weight.reshape(weight.shape[0], weight.shape[1])
    C_out = weight.shape[0]
    HW = H * W

    x = x_nchw.reshape(N, C_in, HW)          # contiguous merge -> no data movement
    itemsize = jnp.dtype(x.dtype).itemsize
    thw, t_co, vmem_limit = _pick_tiles(HW, C_in, C_out, itemsize, N)

    grid = (N, pl.cdiv(C_out, t_co), pl.cdiv(HW, thw))

    # Route everything except truly tiny channel counts to the MXU.
    use_small = (C_in < 8) and (C_out < 8)
    if use_small:
        kernel = _make_small_kernel(C_in, C_out)
        w_arg = weight.astype(jnp.float32).T                 # (C_in, C_out), f32 math
        w_spec = pl.BlockSpec((C_in, C_out), lambda n, c, t: (0, 0))
    else:
        kernel = _mxu_kernel
        w_arg = weight.astype(x.dtype)                       # bf16-friendly on MXU
        w_spec = pl.BlockSpec((t_co, C_in), lambda n, c, t: (c, 0))

    out = pl.pallas_call(
        kernel,
        out_shape=jax.ShapeDtypeStruct((N, C_out, HW), x.dtype),
        grid_spec=pltpu.PrefetchScalarGridSpec(
            num_scalar_prefetch=0,
            grid=grid,
            in_specs=[
                w_spec,
                pl.BlockSpec((1, C_in, thw), lambda n, c, t: (n, 0, t)),
            ],
            out_specs=pl.BlockSpec((1, t_co, thw), lambda n, c, t: (n, c, t)),
        ),
        compiler_params=pltpu.CompilerParams(
            dimension_semantics=("parallel", "parallel", "parallel"),
            vmem_limit_bytes=vmem_limit,
        ),
    )(w_arg, x)

    return out.reshape(N, C_out, H, W)


# ----------------------------- self-test ----------------------------------- #

if __name__ == "__main__":
    key = jax.random.PRNGKey(0)
    k_x, k_w, k_x2, k_w2 = jax.random.split(key, 4)

    # Case 1: tiny channels (small-channel path), the shapes the module implies.
    N, C_in, C_out, Hs, Ws = 2, 4, 3, 16, 16
    x = jax.random.normal(k_x, (N, C_in, Hs, Ws), dtype=jnp.float32)
    bound = 1.0 / (C_in ** 0.5)
    weight = jax.random.uniform(
        k_w, (C_out, C_in, 1, 1), dtype=jnp.float32, minval=-bound, maxval=bound
    )
    out = jax.block_until_ready(outconv_forward(x, weight))
    ref = jnp.tanh(jnp.einsum("nchw,oc->nohw", x, weight[:, :, 0, 0]))
    assert out.shape == (N, C_out, Hs, Ws)
    assert jnp.allclose(out, ref, atol=1e-5, rtol=1e-5), float(
        jnp.max(jnp.abs(out - ref))
    )

    # Case 2: wider channels (MXU path, the typical UNet outconv regime).
    N2, C_in2, C_out2 = 2, 32, 8
    x2 = jax.random.normal(k_x2, (N2, C_in2, Hs, Ws), dtype=jnp.float32)
    bound2 = 1.0 / (C_in2 ** 0.5)
    weight2 = jax.random.uniform(
        k_w2, (C_out2, C_in2), dtype=jnp.float32, minval=-bound2, maxval=bound2
    )
    out2 = jax.block_until_ready(outconv_forward(x2, weight2))
    ref2 = jnp.tanh(jnp.einsum("nchw,oc->nohw", x2, weight2))
    assert out2.shape == (N2, C_out2, Hs, Ws)
    assert jnp.allclose(out2, ref2, atol=1e-4, rtol=1e-4), float(
        jnp.max(jnp.abs(out2 - ref2))
    )

    print("KERNEL_OK")
</pallas_src>

<mosaic_0001>
module attributes {stable_mosaic.version = 11 : i64} {
  func.func @kernel(%arg0: i32, %arg1: i32, %arg2: i32, %arg3: memref<4x3xf32, #tpu.memory_space<vmem>>, %arg4: memref<1x4x256xf32, #tpu.memory_space<vmem>>, %arg5: memref<1x3x256xf32, #tpu.memory_space<vmem>>) attributes {dimension_semantics = [#tpu.dimension_semantics<parallel>, #tpu.dimension_semantics<parallel>, #tpu.dimension_semantics<parallel>], iteration_bounds = array<i64: 2, 1, 1>, scalar_prefetch = 0 : i64, scratch_operands = 0 : i64, tpu.core_type = #tpu.core_type<tc>, window_params = [{pipeline_mode = #tpu.pipeline_mode<synchronous>, transform_indices = @transform_0, window_bounds = array<i64: 4, 3>}, {transform_indices = @transform_1, window_bounds = array<i64: 1, 4, 256>}, {transform_indices = @transform_2, window_bounds = array<i64: 1, 3, 256>}]} {
    %c0 = arith.constant 0 : index
    %c0_0 = arith.constant 0 : index
    %c0_1 = arith.constant 0 : index
    %0 = vector.load %arg4[%c0, %c0_0, %c0_1] : memref<1x4x256xf32, #tpu.memory_space<vmem>>, vector<1x4x256xf32>
    %1 = vector.shape_cast %0 : vector<1x4x256xf32> to vector<4x256xf32>
    %c0_2 = arith.constant 0 : index
    %c0_3 = arith.constant 0 : index
    %2 = vector.load %arg3[%c0_2, %c0_3] : memref<4x3xf32, #tpu.memory_space<vmem>>, vector<4x1xf32>
    %3 = vector.broadcast %2 : vector<4x1xf32> to vector<4x256xf32>
    %4 = arith.mulf %1, %3 : vector<4x256xf32>
    %cst = arith.constant dense<0.000000e+00> : vector<256xf32>
    %5 = vector.multi_reduction <add>, %4, %cst [0] : vector<4x256xf32> to vector<256xf32>
    %6 = vector.shape_cast %5 : vector<256xf32> to vector<1x256xf32>
    %7 = math.tanh %6 : vector<1x256xf32>
    %c0_4 = arith.constant 0 : index
    %c1 = arith.constant 1 : index
    %8 = vector.load %arg3[%c0_4, %c1] : memref<4x3xf32, #tpu.memory_space<vmem>>, vector<4x1xf32>
    %9 = vector.broadcast %8 : vector<4x1xf32> to vector<4x256xf32>
    %10 = arith.mulf %1, %9 : vector<4x256xf32>
    %cst_5 = arith.constant dense<0.000000e+00> : vector<256xf32>
    %11 = vector.multi_reduction <add>, %10, %cst_5 [0] : vector<4x256xf32> to vector<256xf32>
    %12 = vector.shape_cast %11 : vector<256xf32> to vector<1x256xf32>
    %13 = math.tanh %12 : vector<1x256xf32>
    %c0_6 = arith.constant 0 : index
    %c2 = arith.constant 2 : index
    %14 = vector.load %arg3[%c0_6, %c2] : memref<4x3xf32, #tpu.memory_space<vmem>>, vector<4x1xf32>
    %15 = vector.broadcast %14 : vector<4x1xf32> to vector<4x256xf32>
    %16 = arith.mulf %1, %15 : vector<4x256xf32>
    %cst_7 = arith.constant dense<0.000000e+00> : vector<256xf32>
    %17 = vector.multi_reduction <add>, %16, %cst_7 [0] : vector<4x256xf32> to vector<256xf32>
    %18 = vector.shape_cast %17 : vector<256xf32> to vector<1x256xf32>
    %19 = math.tanh %18 : vector<1x256xf32>
    %20 = tpu.concatenate %7, %13, %19 in 0 : vector<1x256xf32>, vector<1x256xf32>, vector<1x256xf32> -> vector<3x256xf32>
    %c0_8 = arith.constant 0 : index
    %c0_9 = arith.constant 0 : index
    %c0_10 = arith.constant 0 : index
    %21 = vector.load %arg5[%c0_8, %c0_9, %c0_10] : memref<1x3x256xf32, #tpu.memory_space<vmem>>, vector<1x3x256xf32>
    %22 = vector.shape_cast %21 : vector<1x3x256xf32> to vector<3x256xf32>
    %23 = vector.shape_cast %20 : vector<3x256xf32> to vector<1x3x256xf32>
    tpu.vector_store %arg5[%c0_8, %c0_9, %c0_10], %23 {strides = array<i32>} : memref<1x3x256xf32, #tpu.memory_space<vmem>>, vector<1x3x256xf32>,
    return
  }
  func.func @transform_0(%arg0: i32, %arg1: i32, %arg2: i32) -> (i32, i32) {
    %c0_i32 = arith.constant 0 : i32
    %c0_i32_0 = arith.constant 0 : i32
    %c0_i32_1 = arith.constant 0 : i32
    return %c0_i32, %c0_i32_0 : i32, i32
  }
  func.func @transform_1(%arg0: i32, %arg1: i32, %arg2: i32) -> (i32, i32, i32) {
    %c0_i32 = arith.constant 0 : i32
    %c0_i32_0 = arith.constant 0 : i32
    return %arg0, %c0_i32, %arg2 : i32, i32, i32
  }
  func.func @transform_2(%arg0: i32, %arg1: i32, %arg2: i32) -> (i32, i32, i32) {
    %c0_i32 = arith.constant 0 : i32
    return %arg0, %arg1, %arg2 : i32, i32, i32
  }
}

</mosaic_0001>

<llo_original>
// kernel: tpu_custom_call.1
$region0: #{tpu_custom_call.1}
  #allocation0 [shape = 'u32[]', space=smem, size = 0x4, offset = 0x4, fixed_abs, tag = 'smem constant byte address 0x4 - core index']
  #allocation1 [shape = 'u32[72,128]{1,0:T(1,128)}', space=vmem, size = 0x9000, scoped, tag = 'internal scratch']
  %s0 = inlined_call_operand.hbm [shape: f32[4,3], index: 0, kind: input, shape index: {}]
  %s1 = inlined_call_operand.hbm [shape: f32[2,4,256], index: 1, kind: input, shape index: {}]
  %s2 = inlined_call_operand.vmem [shape: f32[2,3,256], index: 2, kind: output, shape index: {}]
  %s3 = sld [smem:[#allocation0]]
  $region49: #{tpu_custom_call.1} parent=0
    _
  %s5 = ssub.s32 1, %s3
  %s6 = scalar_select 0, %s5, %s3
  $region1: #{tpu_custom_call.1} parent=0
    #allocation2 [shape = 'u8[2048]{0}', space=vmem, size = 0x800, scoped, tag = 'input window, operand 0, single buffered']
    #allocation3 [shape = 's32[2]{0}', space=sflag, size = 0x8, scoped, tag = 'scoped memory for tpu_custom_call.1']
    #allocation4 [shape = 'u8[8192]{0}', space=vmem, size = 0x2000, scoped, tag = 'input window, operand 1']
    #allocation5 [shape = 's32[2]{0}', space=sflag, size = 0x8, scoped, tag = 'scoped memory for tpu_custom_call.1']
    %7 = vsyncpa [#allocation3], 0
    %8 = vsyncpa [#allocation5], 0
    %s9 = scalar_lea.sflag [#allocation5], 1
    %10 = vsyncpa %s9, 0
    loop: start=0, step=1, limit=4
    $region2: #{tpu_custom_call.1} parent=1 // loop_pre_header
      _
    $region3: #{tpu_custom_call.1} parent=1 // loop_header
      %s12 = sphi 0, %s16
      %p13 = scmp.ge.s32.totalorder %s12, 4
      %s19 = sphi 0, %s38
      %s20 = sphi 0, %s34
      %s21 = sphi 0, %s30
      %s22 = sphi 0, %s19
      %s23 = sphi 0, %s20
      %s24 = sphi 0, %s21
      %s25 = sphi 0, %s22
      %s26 = sphi 0, %s23
      %s27 = sphi 0, %s24
      %s39 = sphi 0, %s39
      %s41 = sphi 0, %s39
      %s42 = sphi 0, %s41
      %s56 = sphi 0, %s42
      %s64 = sphi 0, %s66
      %s67 = sphi 0, %s64
      %s68 = sphi 0, %s67
      %s84 = sphi 0, %s68
      %s94 = sphi 0, %s96
      %s97 = sphi 0, %s94
      %s98 = sphi 0, %s97
      %s114 = sphi 0, %s98
    $region4: #{tpu_custom_call.1} parent=1 // loop_header_branch
      %15 = sbr.rel (%p13) target = $region8
    $region5: #{tpu_custom_call.1} parent=1 // loop_body
      %s17 = ssub.s32 %s12, 1
      %s18 = ssub.s32 %s12, 2
      %s28 = sadd.s32 1, %s21
      %p29 = scmp.ge.s32.totalorder %s28, 1
      %s30 = scalar_select %p29, 0, %s28
      %s31 = sadd.s32 1, %s20
      %s32 = scalar_select %p29, %s31, %s20
      %p33 = scmp.ge.s32.totalorder %s32, 1
      %s34 = scalar_select %p33, 0, %s32
      %s35 = sadd.s32 1, %s19
      %s36 = scalar_select %p33, %s35, %s19
      %p37 = scmp.ge.s32.totalorder %s36, 2
      %s38 = scalar_select %p37, 0, %s36
      %s40 = sadd.s32 %s39, 1
      %p43 = scmp.eq.s32.totalorder %s12, 1
      %p44 = scmp.ne.s32.totalorder %s39, %s41
      %p45 = scmp.eq.s32.totalorder %s12, 0
      %p46 = por %p44, %p45
      %p47 = scmp.ne.s32.totalorder %s39, %s41
      %p48 = scmp.eq.s32.totalorder %s17, 1
      %p49 = por %p47, %p48
      %p50 = scmp.ne.s32.totalorder %s41, %s42
      %p51 = scmp.eq.s32.totalorder %s17, 0
      %p52 = por %p50, %p51
      %p53 = scmp.ne.s32.totalorder %s41, %s42
      %p54 = scmp.eq.s32.totalorder %s18, 1
      %p55 = por %p53, %p54
      %p57 = scmp.ne.s32.totalorder %s42, %s56
      %p58 = scmp.eq.s32.totalorder %s18, 0
      %p59 = por %p57, %p58
      %s60 = ssub.s32 %s19, %s38
      %s61 = ssub.s32 %s21, %s30
      %s62 = sor.u32 %s60, %s61
      %p63 = scmp.eq.s32.totalorder %s62, 0
      %s65 = sadd.s32 %s64, 1
      %s66 = scalar_select %p63, %s64, %s65
      %p69 = pneg %p63
      %p70 = scmp.eq.s32.totalorder %s12, 1
      %p71 = por %p69, %p70
      %p72 = scmp.ne.s32.totalorder %s64, %s67
      %p73 = scmp.eq.s32.totalorder %s12, 0
      %p74 = por %p72, %p73
      %p75 = scmp.ne.s32.totalorder %s64, %s67
      %p76 = scmp.eq.s32.totalorder %s17, 1
      %p77 = por %p75, %p76
      %p78 = scmp.ne.s32.totalorder %s67, %s68
      %p79 = scmp.eq.s32.totalorder %s17, 0
      %p80 = por %p78, %p79
      %p81 = scmp.ne.s32.totalorder %s67, %s68
      %p82 = scmp.eq.s32.totalorder %s18, 1
      %p83 = por %p81, %p82
      %p85 = scmp.ne.s32.totalorder %s68, %s84
      %p86 = scmp.eq.s32.totalorder %s18, 0
      %p87 = por %p85, %p86
      %s88 = ssub.s32 %s19, %s38
      %s89 = ssub.s32 %s20, %s34
      %s90 = sor.u32 %s88, %s89
      %s91 = ssub.s32 %s21, %s30
      %s92 = sor.u32 %s90, %s91
      %p93 = scmp.eq.s32.totalorder %s92, 0
      %s95 = sadd.s32 %s94, 1
      %s96 = scalar_select %p93, %s94, %s95
      %p99 = pneg %p93
      %p100 = scmp.eq.s32.totalorder %s12, 1
      %p101 = por %p99, %p100
      %p102 = scmp.ne.s32.totalorder %s94, %s97
      %p103 = scmp.eq.s32.totalorder %s12, 0
      %p104 = por %p102, %p103
      %p105 = scmp.ne.s32.totalorder %s94, %s97
      %p106 = scmp.eq.s32.totalorder %s17, 1
      %p107 = por %p105, %p106
      %p108 = scmp.ne.s32.totalorder %s97, %s98
      %p109 = scmp.eq.s32.totalorder %s17, 0
      %p110 = por %p108, %p109
      %p111 = scmp.ne.s32.totalorder %s97, %s98
      %p112 = scmp.eq.s32.totalorder %s18, 1
      %p113 = por %p111, %p112
      %p115 = scmp.ne.s32.totalorder %s98, %s114
      %p116 = scmp.eq.s32.totalorder %s18, 0
      %p117 = por %p115, %p116
      %p118 = scmp.le.s32.totalorder 1, %s12
      %p119 = scmp.lt.s32.totalorder %s12, 3
      %p120 = pnand %p118, %p119
      %p121 = pneg %p120
      // Predicated region
      $region9: #{tpu_custom_call.1} parent=5 // pred_check
        _
      $region10: #{tpu_custom_call.1} parent=5 // pred_check_branch
        %123 = sbr.rel (%p120) target = $region12
      $region11: #{tpu_custom_call.1} parent=5 // pred_region
        %s124 = ssub.s32 %s12, 1
        // Predicated region
        $region13: #{tpu_custom_call.1} parent=11 // pred_check
          %p125 = pneg %p52
        $region14: #{tpu_custom_call.1} parent=11 // pred_check_branch
          %127 = sbr.rel (%p125) target = $region16
        $region15: #{tpu_custom_call.1} parent=11 // pred_region
          %129 = vsyncadd [#allocation3], 0
          %s131 = sshll.u32 %s0, 4
          %s132 = int_to_ptr.hbm [resolvable:$true] %s131
          %s133 = sshll.u32 [#allocation2], 4
          %s134 = int_to_ptr.vmem [resolvable:$true] %s133
          %136 = dma.hbm_to_vmem [thread:$0]  %s132, 64, %s134, [#allocation3]
        $region16: #{tpu_custom_call.1} parent=11 // pred_fallthru
          _
      $region12: #{tpu_custom_call.1} parent=5 // pred_fallthru
        _
      %p137 = scmp.lt.s32.totalorder %s12, 2
      // Predicated region
      $region17: #{tpu_custom_call.1} parent=5 // pred_check
        %p138 = pneg %p137
      $region18: #{tpu_custom_call.1} parent=5 // pred_check_branch
        %140 = sbr.rel (%p138) target = $region20
      $region19: #{tpu_custom_call.1} parent=5 // pred_region
        // Predicated region
        $region21: #{tpu_custom_call.1} parent=19 // pred_check
          %p141 = pneg %p74
        $region22: #{tpu_custom_call.1} parent=19 // pred_check_branch
          %143 = sbr.rel (%p141) target = $region24
        $region23: #{tpu_custom_call.1} parent=19 // pred_region
          %s144 = sand.u32 %s64, 1
          %s145 = scalar_lea.sflag [#allocation5], %s144
          %s146 = sand.u32 %s64, 1
          %s147 = smul.addr %s146, 8
          %s148 = scalar_lea.vmem [#allocation4], %s147
          %s149 = smul.u32 2, %s21
          %151 = vsyncadd %s145, 0
          %s152 = smul.addr %s19, 2
          %s153 = sadd.s32 %s149, %s152
          %s154 = smul.addr %s153, 4
          %s155 = scalar_lea.hbm %s1, %s154
          %s157 = sshll.u32 %s155, 4
          %s158 = int_to_ptr.hbm [resolvable:$true] %s157
          %s159 = sshll.u32 %s148, 4
          %s160 = int_to_ptr.vmem [resolvable:$true] %s159
          %162 = dma.hbm_to_vmem [thread:$0]  %s158, 128, %s160, %s145
        $region24: #{tpu_custom_call.1} parent=19 // pred_fallthru
          _
      $region20: #{tpu_custom_call.1} parent=5 // pred_fallthru
        _
      %p163 = scmp.le.s32.totalorder 1, %s12
      %p164 = scmp.lt.s32.totalorder %s12, 3
      %p165 = pnand %p163, %p164
      %p166 = pneg %p165
      // Predicated region
      $region25: #{tpu_custom_call.1} parent=5 // pred_check
        _
      $region26: #{tpu_custom_call.1} parent=5 // pred_check_branch
        %168 = sbr.rel (%p165) target = $region28
      $region27: #{tpu_custom_call.1} parent=5 // pred_region
        %s169 = ssub.s32 %s12, 1
        // Predicated region
        $region29: #{tpu_custom_call.1} parent=27 // pred_check
          %p170 = pneg %p52
        $region30: #{tpu_custom_call.1} parent=27 // pred_check_branch
          %172 = sbr.rel (%p170) target = $region32
        $region31: #{tpu_custom_call.1} parent=27 // pred_region
          %174 = dma.done [#allocation3], 64
        $region32: #{tpu_custom_call.1} parent=27 // pred_fallthru
          _
        %s175 = sand.u32 %s67, 1
        %s176 = scalar_lea.sflag [#allocation5], %s175
        %s177 = sand.u32 %s67, 1
        %s178 = smul.addr %s177, 8
        %s179 = scalar_lea.vmem [#allocation4], %s178
        // Predicated region
        $region33: #{tpu_custom_call.1} parent=27 // pred_check
          %p180 = pneg %p80
        $region34: #{tpu_custom_call.1} parent=27 // pred_check_branch
          %182 = sbr.rel (%p180) target = $region36
        $region35: #{tpu_custom_call.1} parent=27 // pred_region
          %184 = dma.done %s176, 128
        $region36: #{tpu_custom_call.1} parent=27 // pred_fallthru
          _
        %p185 = pneg %p52
        %p186 = pneg %p49
        %s187 = sand.u32 %s67, 1
        %s188 = scalar_lea.sflag [#allocation5], %s187
        %s189 = sand.u32 %s67, 1
        %s190 = smul.addr %s189, 8
        %s191 = scalar_lea.vmem [#allocation4], %s190
        %p192 = pneg %p80
        %p193 = pneg %p77
        %p194 = pneg %p110
        %p195 = pneg %p107
        %s196 = smul.u32 2, %s24
        %p197 = scmp.lt.s32.totalorder %s22, 1
        %s198 = scalar_select %p197, %s22, 1
        %p199 = scmp.lt.s32.totalorder %s23, 0
        %s200 = scalar_select %p199, %s23, 0
        %p201 = scmp.lt.s32.totalorder %s196, 1
        %s202 = scalar_select %p201, %s196, 1
        %s203 = smul.addr %s200, 2
        %s204 = sadd.s32 %s202, %s203
        %s205 = smul.addr %s198, 2
        %s206 = sadd.s32 %s204, %s205
        %s207 = smul.addr %s206, 4
        %s208 = scalar_lea.vmem %s2, %s207
        %s209 = smul.u32 2, %s24
        %s210 = smul.u32 2, %s24
        %p211 = scmp.lt.s32.totalorder %s22, 1
        %s212 = scalar_select %p211, %s22, 1
        %p213 = scmp.lt.s32.totalorder %s23, 0
        %s214 = scalar_select %p213, %s23, 0
        %p215 = scmp.lt.s32.totalorder %s210, 1
        %s216 = scalar_select %p215, %s210, 1
        %s217 = smul.addr %s214, 2
        %s218 = sadd.s32 %s216, %s217
        %s219 = smul.addr %s212, 2
        %s220 = sadd.s32 %s218, %s219
        %s221 = smul.addr %s220, 4
        %s222 = scalar_lea.vmem %s2, %s221
        %s223 = smul.u32 2, %s24
        %v224 = vld [vmem:[%s179] sm:$0xff]
        %v225 = vld [vmem:[#allocation2] sm:$0xf]
        %227 = vset.pattern.permute.xlu0 0
        %228 = vperm.xlu0 %227, %v225
        %v229 = vpop.permute.xlu0 %228
        %v231 = vunpack.c.l.s4 839922192
        %v232 = vunpack.c.0.s8 %v231
        %v233 = vperm.slane %v229, %v232
        %v235 = vmul.f32 %v224, %v233
        %237 = vst [vmem:[#allocation1] ss:$2 sm:$0xff] %v235
        %v238 = vld.sshfl [vmem:[#allocation1] sm:$0xff pattern:$0x75316420]
        %v239 = vld.sshfl [vmem:[#allocation1 + $0x8] sm:$0xff pattern:$0x75316420]
        %vm242 = vcmask 1043456
        %v243 = vsel %vm242, %v238, 0.0
        %v244 = vrot.slane %v243, 4
        %v245 = vadd.f32 %v243, %v244
        %v246 = vrot.slane %v245, 2
        %v247 = vadd.f32 %v245, %v246
        %v248 = vrot.slane %v247, 1
        %v249 = vadd.f32 %v247, %v248
        %v250 = vsel %vm242, %v239, 0.0
        %v251 = vrot.slane %v250, 4
        %v252 = vadd.f32 %v250, %v251
        %v253 = vrot.slane %v252, 2
        %v254 = vadd.f32 %v252, %v253
        %v255 = vrot.slane %v254, 1
        %v256 = vadd.f32 %v254, %v255
        %v257 = vtanh.pop %v249
        %v258 = vtanh.pop %v256
        %v259 = vld [vmem:[#allocation2] sm:$0xf]
        %261 = vset.pattern.permute.xlu0 1
        %262 = vperm.xlu0 %261, %v259
        %v263 = vpop.permute.xlu0 %262
        %v265 = vunpack.c.l.s4 839922192
        %v266 = vunpack.c.0.s8 %v265
        %v267 = vperm.slane %v263, %v266
        %v269 = vmul.f32 %v224, %v267
        %271 = vst [vmem:[#allocation1] ss:$2 sm:$0xff] %v269
        %v272 = vld.sshfl [vmem:[#allocation1] sm:$0xff pattern:$0x75316420]
        %v273 = vld.sshfl [vmem:[#allocation1 + $0x8] sm:$0xff pattern:$0x75316420]
        %v276 = vsel %vm242, %v272, 0.0
        %v277 = vrot.slane %v276, 4
        %v278 = vadd.f32 %v276, %v277
        %v279 = vrot.slane %v278, 2
        %v280 = vadd.f32 %v278, %v279
        %v281 = vrot.slane %v280, 1
        %v282 = vadd.f32 %v280, %v281
        %v283 = vsel %vm242, %v273, 0.0
        %v284 = vrot.slane %v283, 4
        %v285 = vadd.f32 %v283, %v284
        %v286 = vrot.slane %v285, 2
        %v287 = vadd.f32 %v285, %v286
        %v288 = vrot.slane %v287, 1
        %v289 = vadd.f32 %v287, %v288
        %v290 = vtanh.pop %v282
        %v291 = vtanh.pop %v289
        %v292 = vld [vmem:[#allocation2] sm:$0xf]
        %294 = vset.pattern.permute.xlu0 2
        %295 = vperm.xlu0 %294, %v292
        %v296 = vpop.permute.xlu0 %295
        %v298 = vunpack.c.l.s4 839922192
        %v299 = vunpack.c.0.s8 %v298
        %v300 = vperm.slane %v296, %v299
        %v302 = vmul.f32 %v224, %v300
        %304 = vst [vmem:[#allocation1] ss:$2 sm:$0xff] %v302
        %v305 = vld.sshfl [vmem:[#allocation1] sm:$0xff pattern:$0x75316420]
        %v306 = vld.sshfl [vmem:[#allocation1 + $0x8] sm:$0xff pattern:$0x75316420]
        %v309 = vsel %vm242, %v305, 0.0
        %v310 = vrot.slane %v309, 4
        %v311 = vadd.f32 %v309, %v310
        %v312 = vrot.slane %v311, 2
        %v313 = vadd.f32 %v311, %v312
        %v314 = vrot.slane %v313, 1
        %v315 = vadd.f32 %v313, %v314
        %v316 = vsel %vm242, %v306, 0.0
        %v317 = vrot.slane %v316, 4
        %v318 = vadd.f32 %v316, %v317
        %v319 = vrot.slane %v318, 2
        %v320 = vadd.f32 %v318, %v319
        %v321 = vrot.slane %v320, 1
        %v322 = vadd.f32 %v320, %v321
        %v323 = vtanh.pop %v315
        %v324 = vtanh.pop %v322
        %vm325 = vcmask 1040384
        %v326 = vsel %vm325, %v257, %v290
        %v327 = vsel %vm325, %v258, %v291
        %vm328 = vcmask 1041408
        %v329 = vsel %vm328, %v326, %v323
        %v330 = vsel %vm328, %v327, %v324
        %v333 = vrot.slane %v330, 4
        %v334 = vsel %vm242, %v329, %v333
        %336 = vst [vmem:[%s222] sm:$0x77] %v334
        %s337 = smul.u32 2, %s24
        %p338 = scmp.lt.s32.totalorder %s22, 1
        %s339 = scalar_select %p338, %s22, 1
        %p340 = scmp.lt.s32.totalorder %s23, 0
        %s341 = scalar_select %p340, %s23, 0
        %p342 = scmp.lt.s32.totalorder %s337, 1
        %s343 = scalar_select %p342, %s337, 1
        %s344 = smul.addr %s341, 2
        %s345 = sadd.s32 %s343, %s344
        %s346 = smul.addr %s339, 2
        %s347 = sadd.s32 %s345, %s346
        %s348 = smul.addr %s347, 4
        %s349 = scalar_lea.vmem %s2, %s348
        // Predicated region
        $region37: #{tpu_custom_call.1} parent=27 // pred_check
          %p350 = pneg %p107
        $region38: #{tpu_custom_call.1} parent=27 // pred_check_branch
          %352 = sbr.rel (%p350) target = $region40
        $region39: #{tpu_custom_call.1} parent=27 // pred_region
          %s353 = smul.u32 2, %s24
        $region40: #{tpu_custom_call.1} parent=27 // pred_fallthru
          _
      $region28: #{tpu_custom_call.1} parent=5 // pred_fallthru
        _
      %p354 = scmp.le.s32.totalorder 2, %s12
      // Predicated region
      $region41: #{tpu_custom_call.1} parent=5 // pred_check
        %p355 = pneg %p354
      $region42: #{tpu_custom_call.1} parent=5 // pred_check_branch
        %357 = sbr.rel (%p355) target = $region44
      $region43: #{tpu_custom_call.1} parent=5 // pred_region
        %s358 = ssub.s32 %s12, 2
        // Predicated region
        $region45: #{tpu_custom_call.1} parent=43 // pred_check
          %p359 = pneg %p113
        $region46: #{tpu_custom_call.1} parent=43 // pred_check_branch
          %361 = sbr.rel (%p359) target = $region48
        $region47: #{tpu_custom_call.1} parent=43 // pred_region
          %s362 = smul.u32 2, %s27
          %p363 = scmp.lt.s32.totalorder %s25, 1
          %s364 = scalar_select %p363, %s25, 1
          %p365 = scmp.lt.s32.totalorder %s26, 0
          %s366 = scalar_select %p365, %s26, 0
          %p367 = scmp.lt.s32.totalorder %s362, 1
          %s368 = scalar_select %p367, %s362, 1
          %s369 = smul.addr %s366, 2
          %s370 = sadd.s32 %s368, %s369
          %s371 = smul.addr %s364, 2
          %s372 = sadd.s32 %s370, %s371
          %s373 = smul.addr %s372, 4
          %s374 = scalar_lea.vmem %s2, %s373
        $region48: #{tpu_custom_call.1} parent=43 // pred_fallthru
          _
      $region44: #{tpu_custom_call.1} parent=5 // pred_fallthru
        _
    $region6: #{tpu_custom_call.1} parent=1 // loop_footer
      %s16 = sadd.s32 1, %s12
    $region7: #{tpu_custom_call.1} parent=1 // loop_footer_branch
      %11 = sbr.rel target = $region3
    $region8: #{tpu_custom_call.1} parent=1 // loop_exit
      _
    %375 = vsyncpa [#allocation3], 1
    %s376 = scalar_lea.sflag [#allocation3], 1
    %377 = vsyncpa %s376, 1
    %378 = vsyncpa [#allocation5], 1
    %s379 = scalar_lea.sflag [#allocation5], 1
    %380 = vsyncpa %s379, 1

</llo_original>
